<compile_context>
chip_gen: v7x
topology: tpu7x:2x2x1
jax: 0.10.0
libtpu: 0.0.40
codegen_flags: <defaults>
</compile_context>

<pallas_src>
import math

import jax
import jax.numpy as jnp
from jax import lax
from jax.experimental import pallas as pl
from jax.experimental.pallas import tpu as pltpu


def _round_up(x, mult):
    return ((x + mult - 1) // mult) * mult


def _vmem_capacity_bytes():
    try:
        return int(pltpu.get_tpu_info().vmem_capacity_bytes)
    except Exception:
        return 64 * 1024 * 1024  # assume the smallest (v7x) if the query fails


def _default_tile_n():
    # 128 MiB VMEM parts (v5e / v6e): 2048-wide class tiles; 64 MiB (v7x): 1024.
    return 2048 if _vmem_capacity_bytes() >= 100 * 1024 * 1024 else 1024


def _default_vmem_limit():
    return (96 if _vmem_capacity_bytes() >= 100 * 1024 * 1024 else 48) * 1024 * 1024


def prepare_arcmargin_weight(weight):
    """One-time (per parameter update) prep — cache these with the parameter.

    Returns (weight_bf16 (N, D), w_inv (1, N) f32).  Doing this per forward
    call would re-read the full N*D weight from HBM, which the kernel avoids.
    """
    wf = weight.astype(jnp.float32)
    w_inv = lax.rsqrt(jnp.maximum(jnp.sum(wf * wf, axis=1), 1e-24)).reshape(1, -1)
    return wf.astype(jnp.bfloat16), w_inv.astype(jnp.float32)


def make_arcmargin_kernel(s, m, easy_margin, tile_n, n_class_tiles):
    cos_m = math.cos(m)
    sin_m = math.sin(m)
    th = math.cos(math.pi - m)
    mm = math.sin(math.pi - m) * m

    def kernel(flags_ref, label_ref, x_ref, xinv_ref, w_ref, winv_ref, o_ref):
        jc = pl.program_id(0)  # class-tile index (outer, megacore-sharded)
        ib = pl.program_id(1)  # batch-tile index (inner -> weight tile resident)

        # MXU: bf16 NT contraction (TB, D) x (TN, D)^T with f32 accumulation.
        raw = lax.dot_general(
            x_ref[...], w_ref[...], (((1,), (1,)), ((), ())),
            preferred_element_type=jnp.float32)
        # Fold the cached inverse L2 norms: cosine stays in f32.
        cosine = raw * xinv_ref[...] * winv_ref[...]        # (TB,1)*(1,TN) bcast

        has_label = flags_ref[ib * n_class_tiles + jc] > 0

        @pl.when(has_label)
        def _():
            # phi = cos(theta + m); clamp sqrt arg so rounding never yields NaN.
            sine = jnp.sqrt(jnp.maximum(1.0 - cosine * cosine, 0.0))
            phi = cosine * cos_m - sine * sin_m
            if easy_margin:
                phi = jnp.where(cosine > 0.0, phi, cosine)
            else:
                phi = jnp.where(cosine - th > 0.0, phi, cosine - mm)
            tb, tn = cosine.shape
            local_ids = lax.broadcasted_iota(jnp.int32, (tb, tn), 1)
            target = label_ref[...] - jc * tile_n           # (TB, 1) tile-local id
            out = jnp.where(local_ids == target, phi, cosine)
            o_ref[...] = (out * s).astype(o_ref.dtype)

        @pl.when(jnp.logical_not(has_label))
        def _():
            # Most class tiles hold no label of this batch tile: skip the margin
            # math entirely and emit plain scaled cosine (keeps DMA the binder).
            o_ref[...] = (cosine * s).astype(o_ref.dtype)

    return kernel


def arc_margin_product(x, weight_bf16, w_inv, label, *, s=32.0, m=0.5,
                       easy_margin=False, tile_b=None, tile_n=None,
                       out_dtype=jnp.float32):
    """x: (B, D) float, weight_bf16: (N, D) bf16, w_inv: (1, N) f32,
    label: (B,) int -> (B, N) logits in out_dtype."""
    B, D = x.shape
    N, D2 = weight_bf16.shape
    assert D == D2 and w_inv.shape == (1, N)

    # Activation norms in f32 (tiny B*D pass), folded post-matmul; bf16 for MXU.
    xf = x.astype(jnp.float32)
    x_inv = lax.rsqrt(jnp.maximum(jnp.sum(xf * xf, axis=1, keepdims=True), 1e-24))
    x_bf = xf.astype(jnp.bfloat16)
    label_i = label.astype(jnp.int32).reshape(B, 1)

    if tile_b is None:
        tile_b = min(512, _round_up(B, 16))          # 16: bf16 sublane packing
    if tile_n is None:
        tile_n = min(_default_tile_n(), _round_up(N, 128))

    Bp, Np = _round_up(B, tile_b), _round_up(N, tile_n)
    if Bp != B:
        x_bf = jnp.pad(x_bf, ((0, Bp - B), (0, 0)))
        x_inv = jnp.pad(x_inv, ((0, Bp - B), (0, 0)), constant_values=1.0)
        label_i = jnp.pad(label_i, ((0, Bp - B), (0, 0)), constant_values=-1)
    if Np != N:
        # TODO(synk): pad once at parameter-prep time so large class counts never
        # pay a per-call weight copy (this branch is a no-op when tile_n | N).
        weight_bf16 = jnp.pad(weight_bf16, ((0, Np - N), (0, 0)))
        w_inv = jnp.pad(w_inv, ((0, 0), (0, Np - N)), constant_values=1.0)

    n_ct, n_bt = Np // tile_n, Bp // tile_b

    # Per-(batch-tile, class-tile) flag: does the tile hold any sample's label?
    bt_of_row = jnp.arange(B, dtype=jnp.int32) // tile_b
    ct_of_lab = jnp.clip(label.astype(jnp.int32), 0, N - 1) // tile_n
    flags = jnp.zeros((n_bt * n_ct,), jnp.int32).at[
        bt_of_row * n_ct + ct_of_lab].add(1)

    kernel = make_arcmargin_kernel(s, m, easy_margin, tile_n, n_ct)

    grid_spec = pltpu.PrefetchScalarGridSpec(
        num_scalar_prefetch=1,
        grid=(n_ct, n_bt),   # class tiles outer (weight streamed once, megacore
                             # shards the weight), batch tiles inner.
        in_specs=[
            pl.BlockSpec((tile_b, 1), lambda jc, ib, flg: (ib, 0)),   # label  i32
            pl.BlockSpec((tile_b, D), lambda jc, ib, flg: (ib, 0)),   # x      bf16
            pl.BlockSpec((tile_b, 1), lambda jc, ib, flg: (ib, 0)),   # 1/||x|| f32
            pl.BlockSpec((tile_n, D), lambda jc, ib, flg: (jc, 0)),   # W (N,D) bf16
            pl.BlockSpec((1, tile_n), lambda jc, ib, flg: (0, jc)),   # 1/||w|| f32
        ],
        out_specs=pl.BlockSpec((tile_b, tile_n), lambda jc, ib, flg: (ib, jc)),
    )

    out = pl.pallas_call(
        kernel,
        out_shape=jax.ShapeDtypeStruct((Bp, Np), out_dtype),
        grid_spec=grid_spec,
        compiler_params=pltpu.CompilerParams(
            dimension_semantics=("parallel", "arbitrary"),
            vmem_limit_bytes=_default_vmem_limit(),
        ),
    )(flags, label_i, x_bf, x_inv, weight_bf16, w_inv)

    return out[:B, :N]


def _reference(x, weight, label, *, s=32.0, m=0.5, easy_margin=False,
               quantize_inputs=False):
    """Pure-JAX ArcFace reference. quantize_inputs=True mimics the kernel's
    bf16 MXU inputs (f32 norms, f32 accumulation) for a tight check."""
    cos_m, sin_m = math.cos(m), math.sin(m)
    th, mm = math.cos(math.pi - m), math.sin(math.pi - m) * m
    x_inv = lax.rsqrt(jnp.maximum(jnp.sum(x * x, axis=1, keepdims=True), 1e-24))
    w_inv = lax.rsqrt(
        jnp.maximum(jnp.sum(weight * weight, axis=1), 1e-24)).reshape(1, -1)
    if quantize_inputs:
        x = x.astype(jnp.bfloat16).astype(jnp.float32)
        weight = weight.astype(jnp.bfloat16).astype(jnp.float32)
    cosine = (x @ weight.T) * x_inv * w_inv
    sine = jnp.sqrt(jnp.maximum(1.0 - cosine ** 2, 0.0))
    phi = cosine * cos_m - sine * sin_m
    if easy_margin:
        phi = jnp.where(cosine > 0, phi, cosine)
    else:
        phi = jnp.where(cosine - th > 0, phi, cosine - mm)
    one_hot = jax.nn.one_hot(label, weight.shape[0], dtype=jnp.float32)
    return (one_hot * phi + (1.0 - one_hot) * cosine) * s


if __name__ == "__main__":
    B = 8               # batch
    IN_FEATURES = 128   # module default
    OUT_FEATURES = 200  # module default (exercises the N-padding path: 200 -> 256)

    key = jax.random.PRNGKey(0)
    kx, kw, kl = jax.random.split(key, 3)

    x = jax.random.normal(kx, (B, IN_FEATURES), dtype=jnp.float32)

    # xavier_uniform_ on (out_features, in_features)
    bound = math.sqrt(6.0 / (IN_FEATURES + OUT_FEATURES))
    weight = jax.random.uniform(
        kw, (OUT_FEATURES, IN_FEATURES), dtype=jnp.float32,
        minval=-bound, maxval=bound)

    label = jax.random.randint(kl, (B,), 0, OUT_FEATURES, dtype=jnp.int32)

    # "Parameter-time" prep (cached with the weight, not redone per forward).
    w_bf16, w_inv = prepare_arcmargin_weight(weight)

    out = arc_margin_product(x, w_bf16, w_inv, label, s=32.0, m=0.5,
                             easy_margin=False)
    out = jax.block_until_ready(out)
    assert out.shape == (B, OUT_FEATURES)

    # Tight check against the same math with bf16-quantized MXU inputs.
    ref_q = _reference(x, weight, label, s=32.0, m=0.5, easy_margin=False,
                       quantize_inputs=True)
    assert jnp.allclose(out, ref_q, atol=2e-3, rtol=1e-3), "mismatch (quantized ref)"

    # Loose sanity check against the exact f32 module semantics (bf16 rounding
    # of the weight/activation stream is the only difference).
    ref_f = _reference(x, weight, label, s=32.0, m=0.5, easy_margin=False,
                       quantize_inputs=False)
    assert jnp.allclose(out, ref_f, atol=0.25, rtol=0.02), "mismatch (f32 ref)"

    print("KERNEL_OK")
</pallas_src>

<mosaic_0001>
module attributes {stable_mosaic.version = 11 : i64} {
  func.func @kernel(%arg0: i32, %arg1: i32, %arg2: memref<1xi32, #tpu.memory_space<smem>>, %arg3: memref<16x1xi32, #tpu.memory_space<vmem>>, %arg4: memref<16x128xbf16, #tpu.memory_space<vmem>>, %arg5: memref<16x1xf32, #tpu.memory_space<vmem>>, %arg6: memref<256x128xbf16, #tpu.memory_space<vmem>>, %arg7: memref<1x256xf32, #tpu.memory_space<vmem>>, %arg8: memref<16x256xf32, #tpu.memory_space<vmem>>) attributes {dimension_semantics = [#tpu.dimension_semantics<parallel>, #tpu.dimension_semantics<arbitrary>], iteration_bounds = array<i64: 1, 1>, scalar_prefetch = 1 : i64, scratch_operands = 0 : i64, tpu.core_type = #tpu.core_type<tc>, window_params = [{transform_indices = @transform_0, window_bounds = array<i64: 16, 1>}, {transform_indices = @transform_1, window_bounds = array<i64: 16, 128>}, {transform_indices = @transform_2, window_bounds = array<i64: 16, 1>}, {transform_indices = @transform_3, window_bounds = array<i64: 256, 128>}, {transform_indices = @transform_4, window_bounds = array<i64: 1, 256>}, {transform_indices = @transform_5, window_bounds = array<i64: 16, 256>}]} {
    %c0 = arith.constant 0 : index
    %c0_0 = arith.constant 0 : index
    %0 = vector.load %arg4[%c0, %c0_0] : memref<16x128xbf16, #tpu.memory_space<vmem>>, vector<16x128xbf16>
    %c0_1 = arith.constant 0 : index
    %c0_2 = arith.constant 0 : index
    %1 = vector.load %arg6[%c0_1, %c0_2] : memref<256x128xbf16, #tpu.memory_space<vmem>>, vector<256x128xbf16>
    %cst = arith.constant dense<0.000000e+00> : vector<16x256xf32>
    %2 = tpu.matmul %0, %1, %cst {dimension_numbers = #tpu.dot_dimension_numbers<[1], [1], [0], [0], [0, 0, 1, 0], [], []>} : vector<16x128xbf16>, vector<256x128xbf16>, vector<16x256xf32> -> vector<16x256xf32>
    %c0_3 = arith.constant 0 : index
    %c0_4 = arith.constant 0 : index
    %3 = vector.load %arg5[%c0_3, %c0_4] : memref<16x1xf32, #tpu.memory_space<vmem>>, vector<16x1xf32>
    %4 = vector.broadcast %3 : vector<16x1xf32> to vector<16x256xf32>
    %5 = arith.mulf %2, %4 : vector<16x256xf32>
    %c0_5 = arith.constant 0 : index
    %c0_6 = arith.constant 0 : index
    %6 = vector.load %arg7[%c0_5, %c0_6] : memref<1x256xf32, #tpu.memory_space<vmem>>, vector<1x256xf32>
    %7 = vector.broadcast %6 : vector<1x256xf32> to vector<16x256xf32>
    %8 = arith.mulf %5, %7 : vector<16x256xf32>
    %c1_i32 = arith.constant 1 : i32
    %9 = arith.muli %arg1, %c1_i32 : i32
    %10 = arith.addi %9, %arg0 : i32
    %11 = arith.index_cast %10 : i32 to index
    %12 = memref.load %arg2[%11] : memref<1xi32, #tpu.memory_space<smem>>
    %c0_i32 = arith.constant 0 : i32
    %13 = arith.cmpi sgt, %12, %c0_i32 : i32
    %14 = arith.extui %13 : i1 to i32
    %c0_i32_7 = arith.constant 0 : i32
    %15 = arith.cmpi ne, %14, %c0_i32_7 : i32
    scf.if %15 {
      %19 = arith.mulf %8, %8 : vector<16x256xf32>
      %cst_9 = arith.constant 1.000000e+00 : f32
      %20 = vector.broadcast %cst_9 : f32 to vector<16x256xf32>
      %21 = arith.subf %20, %19 : vector<16x256xf32>
      %cst_10 = arith.constant 0.000000e+00 : f32
      %22 = vector.broadcast %cst_10 : f32 to vector<16x256xf32>
      %23 = arith.maximumf %21, %22 : vector<16x256xf32>
      %24 = math.sqrt %23 : vector<16x256xf32>
      %cst_11 = arith.constant 0.87758255 : f32
      %25 = vector.broadcast %cst_11 : f32 to vector<16x256xf32>
      %26 = arith.mulf %8, %25 : vector<16x256xf32>
      %cst_12 = arith.constant 0.47942555 : f32
      %27 = vector.broadcast %cst_12 : f32 to vector<16x256xf32>
      %28 = arith.mulf %24, %27 : vector<16x256xf32>
      %29 = arith.subf %26, %28 : vector<16x256xf32>
      %cst_13 = arith.constant -0.87758255 : f32
      %30 = vector.broadcast %cst_13 : f32 to vector<16x256xf32>
      %31 = arith.subf %8, %30 : vector<16x256xf32>
      %cst_14 = arith.constant 0.000000e+00 : f32
      %32 = vector.broadcast %cst_14 : f32 to vector<16x256xf32>
      %33 = arith.cmpf ogt, %31, %32 : vector<16x256xf32>
      %cst_15 = arith.constant 0.239712775 : f32
      %34 = vector.broadcast %cst_15 : f32 to vector<16x256xf32>
      %35 = arith.subf %8, %34 : vector<16x256xf32>
      %36 = arith.select %33, %29, %35 : vector<16x256xi1>, vector<16x256xf32>
      %37 = tpu.iota {dimensions = array<i32: 1>} : vector<16x256xi32>
      %c0_16 = arith.constant 0 : index
      %c0_17 = arith.constant 0 : index
      %38 = vector.load %arg3[%c0_16, %c0_17] : memref<16x1xi32, #tpu.memory_space<vmem>>, vector<16x1xi32>
      %c256_i32 = arith.constant 256 : i32
      %39 = arith.muli %arg0, %c256_i32 : i32
      %40 = vector.broadcast %39 : i32 to vector<16x1xi32>
      %41 = arith.subi %38, %40 : vector<16x1xi32>
      %42 = vector.broadcast %41 : vector<16x1xi32> to vector<16x256xi32>
      %43 = arith.cmpi eq, %37, %42 : vector<16x256xi32>
      %44 = arith.select %43, %36, %8 : vector<16x256xi1>, vector<16x256xf32>
      %cst_18 = arith.constant 3.200000e+01 : f32
      %45 = vector.broadcast %cst_18 : f32 to vector<16x256xf32>
      %46 = arith.mulf %44, %45 : vector<16x256xf32>
      %c0_19 = arith.constant 0 : index
      %c0_20 = arith.constant 0 : index
      %47 = vector.load %arg8[%c0_19, %c0_20] : memref<16x256xf32, #tpu.memory_space<vmem>>, vector<16x256xf32>
      tpu.vector_store %arg8[%c0_19, %c0_20], %46 {strides = array<i32>} : memref<16x256xf32, #tpu.memory_space<vmem>>, vector<16x256xf32>,
    } else {
    }
    %true = arith.constant true
    %16 = arith.xori %13, %true : i1
    %17 = arith.extui %16 : i1 to i32
    %c0_i32_8 = arith.constant 0 : i32
    %18 = arith.cmpi ne, %17, %c0_i32_8 : i32
    scf.if %18 {
      %cst_9 = arith.constant 3.200000e+01 : f32
      %19 = vector.broadcast %cst_9 : f32 to vector<16x256xf32>
      %20 = arith.mulf %8, %19 : vector<16x256xf32>
      %c0_10 = arith.constant 0 : index
      %c0_11 = arith.constant 0 : index
      %21 = vector.load %arg8[%c0_10, %c0_11] : memref<16x256xf32, #tpu.memory_space<vmem>>, vector<16x256xf32>
      tpu.vector_store %arg8[%c0_10, %c0_11], %20 {strides = array<i32>} : memref<16x256xf32, #tpu.memory_space<vmem>>, vector<16x256xf32>,
    } else {
    }
    return
  }
  func.func @transform_0(%arg0: i32, %arg1: i32, %arg2: memref<1xi32, #tpu.memory_space<smem>>) -> (i32, i32) {
    %c0_i32 = arith.constant 0 : i32
    %c0_i32_0 = arith.constant 0 : i32
    return %arg1, %c0_i32 : i32, i32
  }
  func.func @transform_1(%arg0: i32, %arg1: i32, %arg2: memref<1xi32, #tpu.memory_space<smem>>) -> (i32, i32) {
    %c0_i32 = arith.constant 0 : i32
    %c0_i32_0 = arith.constant 0 : i32
    return %arg1, %c0_i32 : i32, i32
  }
  func.func @transform_2(%arg0: i32, %arg1: i32, %arg2: memref<1xi32, #tpu.memory_space<smem>>) -> (i32, i32) {
    %c0_i32 = arith.constant 0 : i32
    %c0_i32_0 = arith.constant 0 : i32
    return %arg1, %c0_i32 : i32, i32
  }
  func.func @transform_3(%arg0: i32, %arg1: i32, %arg2: memref<1xi32, #tpu.memory_space<smem>>) -> (i32, i32) {
    %c0_i32 = arith.constant 0 : i32
    %c0_i32_0 = arith.constant 0 : i32
    return %arg0, %c0_i32 : i32, i32
  }
  func.func @transform_4(%arg0: i32, %arg1: i32, %arg2: memref<1xi32, #tpu.memory_space<smem>>) -> (i32, i32) {
    %c0_i32 = arith.constant 0 : i32
    %c0_i32_0 = arith.constant 0 : i32
    return %c0_i32, %arg0 : i32, i32
  }
  func.func @transform_5(%arg0: i32, %arg1: i32, %arg2: memref<1xi32, #tpu.memory_space<smem>>) -> (i32, i32) {
    %c0_i32 = arith.constant 0 : i32
    return %arg1, %arg0 : i32, i32
  }
}

</mosaic_0001>

<llo_original>
// kernel: tpu_custom_call.1
$region0: #{tpu_custom_call.1}
  #allocation0 [shape = 'u32[]', space=smem, size = 0x4, offset = 0x4, fixed_abs, tag = 'smem constant byte address 0x4 - core index']
  #allocation1 [shape = 'u32[144,128]{1,0:T(1,128)}', space=vmem, size = 0x12000, scoped, tag = 'internal scratch']
  #allocation2 [shape = 's32[1]{0}', space=sflag, size = 0x4, scoped, tag = 'scoped memory for tpu_custom_call.1']
  #allocation3 [shape = 's32[1]{0:T(128)S(6)}', space=smem, size = 0x200, scoped, tag = 'prefetched SMEM operand 0']
  %s0 = inlined_call_operand.<no memory space> [shape: s32[1], index: 0, kind: input, shape index: {}]
  %s1 = inlined_call_operand.vmem [shape: s32[16,1], index: 1, kind: input, shape index: {}]
  %s2 = inlined_call_operand.vmem [shape: bf16[16,128], index: 2, kind: input, shape index: {}]
  %s3 = inlined_call_operand.vmem [shape: f32[16,1], index: 3, kind: input, shape index: {}]
  %s4 = inlined_call_operand.hbm [shape: bf16[256,128], index: 4, kind: input, shape index: {}]
  %s5 = inlined_call_operand.vmem [shape: f32[1,256], index: 5, kind: input, shape index: {}]
  %s6 = inlined_call_operand.hbm [shape: f32[16,256], index: 6, kind: output, shape index: {}]
  %s7 = sld [smem:[#allocation0]]
  $region42: #{tpu_custom_call.1} parent=0
    _
  %s9 = ssub.s32 1, %s7
  %s10 = scalar_select 0, %s9, %s7
  %11 = sst [smem:[#allocation3]] %s0
  $region1: #{tpu_custom_call.1} parent=0
    #allocation4 [shape = 'u8[65536]{0}', space=vmem, size = 0x10000, scoped, tag = 'input window, operand 4, single buffered']
    #allocation5 [shape = 's32[1]{0}', space=sflag, size = 0x4, scoped, tag = 'scoped memory for tpu_custom_call.1']
    #allocation6 [shape = 's32[1]{0}', space=sflag, size = 0x4, scoped, tag = 'scoped memory for tpu_custom_call.1']
    #allocation7 [shape = 'u8[16384]{0}', space=vmem, size = 0x4000, scoped, tag = 'output window, operand 0, single buffered']
    %12 = vsyncpa [#allocation5], 0
    %13 = vsyncpa [#allocation6], 0
    // Predicated region
    $region2: #{tpu_custom_call.1} parent=1 // pred_check
      _
    $region3: #{tpu_custom_call.1} parent=1 // pred_check_branch
      %15 = sbr.rel (0) target = $region5
    $region4: #{tpu_custom_call.1} parent=1 // pred_region
      _
    $region5: #{tpu_custom_call.1} parent=1 // pred_fallthru
      _
    // Predicated region
    $region6: #{tpu_custom_call.1} parent=1 // pred_check
      _
    $region7: #{tpu_custom_call.1} parent=1 // pred_check_branch
      %17 = sbr.rel (0) target = $region9
    $region8: #{tpu_custom_call.1} parent=1 // pred_region
      _
    $region9: #{tpu_custom_call.1} parent=1 // pred_fallthru
      _
    // Predicated region
    $region10: #{tpu_custom_call.1} parent=1 // pred_check
      _
    $region11: #{tpu_custom_call.1} parent=1 // pred_check_branch
      %19 = sbr.rel (0) target = $region13
    $region12: #{tpu_custom_call.1} parent=1 // pred_region
      _
    $region13: #{tpu_custom_call.1} parent=1 // pred_fallthru
      _
    // Predicated region
    $region14: #{tpu_custom_call.1} parent=1 // pred_check
      _
    $region15: #{tpu_custom_call.1} parent=1 // pred_check_branch
      %21 = sbr.rel (0) target = $region17
    $region16: #{tpu_custom_call.1} parent=1 // pred_region
      %s23 = ssub.s32 2048, 2048
      %24 = vsyncadd [#allocation5], %s23
      %s25 = sshll.u32 [#allocation4], 4
      %s26 = int_to_ptr.vmem [resolvable:$true] %s25
      %31 = dma.hbm_to_vmem [thread:$0]  %s4, 2048, %s26, [#allocation5], 64, 64, 4
    $region17: #{tpu_custom_call.1} parent=1 // pred_fallthru
      _
    // Predicated region
    $region18: #{tpu_custom_call.1} parent=1 // pred_check
      _
    $region19: #{tpu_custom_call.1} parent=1 // pred_check_branch
      %33 = sbr.rel (0) target = $region21
    $region20: #{tpu_custom_call.1} parent=1 // pred_region
      _
    $region21: #{tpu_custom_call.1} parent=1 // pred_fallthru
      _
    // Predicated region
    $region22: #{tpu_custom_call.1} parent=1 // pred_check
      _
    $region23: #{tpu_custom_call.1} parent=1 // pred_check_branch
      %35 = sbr.rel (0) target = $region25
    $region24: #{tpu_custom_call.1} parent=1 // pred_region
      %36 = dma.done [#allocation5], 2048
    $region25: #{tpu_custom_call.1} parent=1 // pred_fallthru
      _
    %v38 = vld [vmem:[%s2] sm:$0xf]
    %v39 = vld [vmem:[%s2 + $0x4] sm:$0xf]
    %v40 = vld [vmem:[#allocation4] sm:$0xf]
    %v41 = vld [vmem:[#allocation4 + $0x4] sm:$0xf]
    %v42 = vld [vmem:[#allocation4 + $0x8] sm:$0xf]
    %v43 = vld [vmem:[#allocation4 + $0xc] sm:$0xf]
    %v44 = vld [vmem:[#allocation4 + $0x10] sm:$0xf]
    %v45 = vld [vmem:[#allocation4 + $0x14] sm:$0xf]
    %v46 = vld [vmem:[#allocation4 + $0x18] sm:$0xf]
    %v47 = vld [vmem:[#allocation4 + $0x1c] sm:$0xf]
    %v48 = vld [vmem:[#allocation4 + $0x20] sm:$0xf]
    %v49 = vld [vmem:[#allocation4 + $0x24] sm:$0xf]
    %v50 = vld [vmem:[#allocation4 + $0x28] sm:$0xf]
    %v51 = vld [vmem:[#allocation4 + $0x2c] sm:$0xf]
    %v52 = vld [vmem:[#allocation4 + $0x30] sm:$0xf]
    %v53 = vld [vmem:[#allocation4 + $0x34] sm:$0xf]
    %v54 = vld [vmem:[#allocation4 + $0x38] sm:$0xf]
    %v55 = vld [vmem:[#allocation4 + $0x3c] sm:$0xf]
    %v56 = vld [vmem:[#allocation4 + $0x40] sm:$0xf]
    %v57 = vld [vmem:[#allocation4 + $0x44] sm:$0xf]
    %v58 = vld [vmem:[#allocation4 + $0x48] sm:$0xf]
    %v59 = vld [vmem:[#allocation4 + $0x4c] sm:$0xf]
    %v60 = vld [vmem:[#allocation4 + $0x50] sm:$0xf]
    %v61 = vld [vmem:[#allocation4 + $0x54] sm:$0xf]
    %v62 = vld [vmem:[#allocation4 + $0x58] sm:$0xf]
    %v63 = vld [vmem:[#allocation4 + $0x5c] sm:$0xf]
    %v64 = vld [vmem:[#allocation4 + $0x60] sm:$0xf]
    %v65 = vld [vmem:[#allocation4 + $0x64] sm:$0xf]
    %v66 = vld [vmem:[#allocation4 + $0x68] sm:$0xf]
    %v67 = vld [vmem:[#allocation4 + $0x6c] sm:$0xf]
    %v68 = vld [vmem:[#allocation4 + $0x70] sm:$0xf]
    %v69 = vld [vmem:[#allocation4 + $0x74] sm:$0xf]
    %v70 = vld [vmem:[#allocation4 + $0x78] sm:$0xf]
    %v71 = vld [vmem:[#allocation4 + $0x7c] sm:$0xf]
    %v74 = vunpack.c.l.b16 %v38
    %v75 = vunpack.c.l.b16 %v39
    %v76 = vpack.c.b16 %v75, %v74
    %v110 = vunpack.c.l.b16 %v40
    %v111 = vunpack.c.l.b16 %v41
    %v112 = vunpack.c.l.b16 %v42
    %v113 = vunpack.c.l.b16 %v43
    %v114 = vunpack.c.l.b16 %v44
    %v115 = vunpack.c.l.b16 %v45
    %v116 = vunpack.c.l.b16 %v46
    %v117 = vunpack.c.l.b16 %v47
    %v118 = vunpack.c.l.b16 %v48
    %v119 = vunpack.c.l.b16 %v49
    %v120 = vunpack.c.l.b16 %v50
    %v121 = vunpack.c.l.b16 %v51
    %v122 = vunpack.c.l.b16 %v52
    %v123 = vunpack.c.l.b16 %v53
    %v124 = vunpack.c.l.b16 %v54
    %v125 = vunpack.c.l.b16 %v55
    %v126 = vunpack.c.l.b16 %v56
    %v127 = vunpack.c.l.b16 %v57
    %v128 = vunpack.c.l.b16 %v58
    %v129 = vunpack.c.l.b16 %v59
    %v130 = vunpack.c.l.b16 %v60
    %v131 = vunpack.c.l.b16 %v61
    %v132 = vunpack.c.l.b16 %v62
    %v133 = vunpack.c.l.b16 %v63
    %v134 = vunpack.c.l.b16 %v64
    %v135 = vunpack.c.l.b16 %v65
    %v136 = vunpack.c.l.b16 %v66
    %v137 = vunpack.c.l.b16 %v67
    %v138 = vunpack.c.l.b16 %v68
    %v139 = vunpack.c.l.b16 %v69
    %v140 = vunpack.c.l.b16 %v70
    %v141 = vunpack.c.l.b16 %v71
    %v142 = vpack.c.b16 %v111, %v110
    %v143 = vpack.c.b16 %v113, %v112
    %v144 = vpack.c.b16 %v115, %v114
    %v145 = vpack.c.b16 %v117, %v116
    %v146 = vpack.c.b16 %v119, %v118
    %v147 = vpack.c.b16 %v121, %v120
    %v148 = vpack.c.b16 %v123, %v122
    %v149 = vpack.c.b16 %v125, %v124
    %v150 = vpack.c.b16 %v127, %v126
    %v151 = vpack.c.b16 %v129, %v128
    %v152 = vpack.c.b16 %v131, %v130
    %v153 = vpack.c.b16 %v133, %v132
    %v154 = vpack.c.b16 %v135, %v134
    %v155 = vpack.c.b16 %v137, %v136
    %v156 = vpack.c.b16 %v139, %v138
    %v157 = vpack.c.b16 %v141, %v140
    %174 = vmatprep.subr.bf16.mxu0 0
    %175 = vmatpush1.bf16.xpose.msra.mxu0 %v142
    %176 = vmatprep.subr.bf16.mxu0 0
    %177 = vmatpush1.bf16.xpose.msra.mxu0 %v143
    %178 = vmatprep.subr.bf16.mxu0 0
    %179 = vmatpush1.bf16.xpose.msra.mxu0 %v144
    %180 = vmatprep.subr.bf16.mxu0 0
    %181 = vmatpush1.bf16.xpose.msra.mxu0 %v145
    %182 = vmatprep.subr.bf16.mxu0 0
    %183 = vmatpush1.bf16.xpose.msra.mxu0 %v146
    %184 = vmatprep.subr.bf16.mxu0 0
    %185 = vmatpush1.bf16.xpose.msra.mxu0 %v147
    %186 = vmatprep.subr.bf16.mxu0 0
    %187 = vmatpush1.bf16.xpose.msra.mxu0 %v148
    %188 = vmatprep.subr.bf16.mxu0 0
    %189 = vmatpush1.bf16.xpose.msra.mxu0 %v149
    %190 = vmatprep.subr.bf16.mxu0 0
    %191 = vmatpush1.bf16.xpose.msra.mxu0 %v150
    %192 = vmatprep.subr.bf16.mxu0 0
    %193 = vmatpush1.bf16.xpose.msra.mxu0 %v151
    %194 = vmatprep.subr.bf16.mxu0 0
    %195 = vmatpush1.bf16.xpose.msra.mxu0 %v152
    %196 = vmatprep.subr.bf16.mxu0 0
    %197 = vmatpush1.bf16.xpose.msra.mxu0 %v153
    %198 = vmatprep.subr.bf16.mxu0 0
    %199 = vmatpush1.bf16.xpose.msra.mxu0 %v154
    %200 = vmatprep.subr.bf16.mxu0 0
    %201 = vmatpush1.bf16.xpose.msra.mxu0 %v155
    %202 = vmatprep.subr.bf16.mxu0 0
    %203 = vmatpush1.bf16.xpose.msra.mxu0 %v156
    %204 = vmatprep.subr.bf16.mxu0 0
    %205 = vmatpush1.bf16.xpose.msra.mxu0 %v157
    %206 = vmatprep.mubr.bf16.mxu0 0
    %207 = vmatmul.mubr.bf16.gmra.mrb[0].mxu0 %v76
    %v208 = vpop.f32.mrb[0].mxu0
    %v209 = vadd.f32 0.0, %v208
    %v210 = vpop.f32.mrb[0].mxu0
    %v211 = vadd.f32 0.0, %v210
    %v212 = vpop.f32.mrb[0].mxu0
    %v213 = vadd.f32 0.0, %v212
    %v214 = vpop.f32.mrb[0].mxu0
    %v215 = vadd.f32 0.0, %v214
    %216 = vdwg.mxu0
    %v217 = vld [vmem:[%s3] sm:$0xff]
    %v218 = vld [vmem:[%s3 + $0x8] sm:$0xff]
    %220 = vset.pattern.permute.xlu0 0
    %221 = vperm.xlu0 %220, %v217
    %v222 = vpop.permute.xlu0 %221
    %225 = vset.pattern.permute.xlu0 0
    %226 = vperm.xlu0 %225, %v218
    %v227 = vpop.permute.xlu0 %226
    %v229 = vmul.f32 %v209, %v222
    %v230 = vmul.f32 %v211, %v222
    %v231 = vmul.f32 %v213, %v227
    %v232 = vmul.f32 %v215, %v227
    %v233 = vld [vmem:[%s5] sm:$0x3]
    %v235 = vlaneseq
    %v236 = vshrl.u32 %v235, 7
    %v237 = vsub.s32 0, %v236
    %v238 = vrot.slane %v233, %v237
    %v239 = vlaneseq
    %v240 = vshrl.u32 %v239, 7
    %v241 = vsub.s32 1, %v240
    %v242 = vrot.slane %v233, %v241
    %v245 = vmul.f32 %v229, %v238
    %v246 = vmul.f32 %v230, %v242
    %v247 = vmul.f32 %v231, %v238
    %v248 = vmul.f32 %v232, %v242
    %s249 = sadd.s32 0, 0
    %s250 = sld [smem:[#allocation3 + %s249]]
    %p251 = scmp.gt.s32.totalorder %s250, 0
    // Predicated region
    $region26: #{tpu_custom_call.1} parent=1 // pred_check
      %p252 = pneg %p251
    $region27: #{tpu_custom_call.1} parent=1 // pred_check_branch
      %254 = sbr.rel (%p252) target = $region29
    $region28: #{tpu_custom_call.1} parent=1 // pred_region
      %v255 = vmul.f32 %v245, %v245
      %v256 = vmul.f32 %v246, %v246
      %v257 = vmul.f32 %v247, %v247
      %v258 = vmul.f32 %v248, %v248
      %v259 = vsub.f32 1.0, %v255
      %v260 = vsub.f32 1.0, %v256
      %v261 = vsub.f32 1.0, %v257
      %v262 = vsub.f32 1.0, %v258
      %v263 = vmax.f32 %v259, 0.0
      %v264 = vmax.f32 %v260, 0.0
      %v265 = vmax.f32 %v261, 0.0
      %v266 = vmax.f32 %v262, 0.0
      %v267 = vrsqrt.pop %v263
      %v268 = vmul.f32 %v263, %v267
      %vm269 = vcmp.eq.f32.partialorder %v263, inf
      %v270 = vsel %vm269, %v263, %v268
      %vm271 = vcmp.eq.f32.partialorder %v263, 0.0
      %v272 = vand.u32 %v263, 2147483648
      %v273 = vsel %vm271, %v272, %v270
      %v274 = vrsqrt.pop %v264
      %v275 = vmul.f32 %v264, %v274
      %vm276 = vcmp.eq.f32.partialorder %v264, inf
      %v277 = vsel %vm276, %v264, %v275
      %vm278 = vcmp.eq.f32.partialorder %v264, 0.0
      %v279 = vand.u32 %v264, 2147483648
      %v280 = vsel %vm278, %v279, %v277
      %v281 = vrsqrt.pop %v265
      %v282 = vmul.f32 %v265, %v281
      %vm283 = vcmp.eq.f32.partialorder %v265, inf
      %v284 = vsel %vm283, %v265, %v282
      %vm285 = vcmp.eq.f32.partialorder %v265, 0.0
      %v286 = vand.u32 %v265, 2147483648
      %v287 = vsel %vm285, %v286, %v284
      %v288 = vrsqrt.pop %v266
      %v289 = vmul.f32 %v266, %v288
      %vm290 = vcmp.eq.f32.partialorder %v266, inf
      %v291 = vsel %vm290, %v266, %v289
      %vm292 = vcmp.eq.f32.partialorder %v266, 0.0
      %v293 = vand.u32 %v266, 2147483648
      %v294 = vsel %vm292, %v293, %v291
      %v295 = vmul.f32 %v245, 0.87758255
      %v296 = vmul.f32 %v246, 0.87758255
      %v297 = vmul.f32 %v247, 0.87758255
      %v298 = vmul.f32 %v248, 0.87758255
      %v299 = vmul.f32 %v273, 0.47942555
      %v300 = vmul.f32 %v280, 0.47942555
      %v301 = vmul.f32 %v287, 0.47942555
      %v302 = vmul.f32 %v294, 0.47942555
      %v303 = vsub.f32 %v295, %v299
      %v304 = vsub.f32 %v296, %v300
      %v305 = vsub.f32 %v297, %v301
      %v306 = vsub.f32 %v298, %v302
      %v307 = vsub.f32 %v245, -0.87758255
      %v308 = vsub.f32 %v246, -0.87758255
      %v309 = vsub.f32 %v247, -0.87758255
      %v310 = vsub.f32 %v248, -0.87758255
      %vm311 = vcmp.gt.f32.partialorder %v307, 0.0
      %vm312 = vcmp.gt.f32.partialorder %v308, 0.0
      %vm313 = vcmp.gt.f32.partialorder %v309, 0.0
      %vm314 = vcmp.gt.f32.partialorder %v310, 0.0
      %v315 = vsub.f32 %v245, 0.23971277
      %v316 = vsub.f32 %v246, 0.23971277
      %v317 = vsub.f32 %v247, 0.23971277
      %v318 = vsub.f32 %v248, 0.23971277
      %v319 = vsel %vm311, %v303, %v315
      %v320 = vsel %vm312, %v304, %v316
      %v321 = vsel %vm313, %v305, %v317
      %v322 = vsel %vm314, %v306, %v318
      %v323 = vlaneseq
      %v324 = vand.u32 %v323, 127
      %v325 = vadd.s32 %v324, 128
      %v326 = vld [vmem:[%s1] sm:$0xff]
      %v327 = vld [vmem:[%s1 + $0x8] sm:$0xff]
      %s328 = smul.u32 0, 256
      %v329 = vstv %s328
      %v330 = vsub.s32 %v326, %v329
      %v331 = vsub.s32 %v327, %v329
      %332 = vset.pattern.permute.xlu0 0
      %333 = vperm.xlu0 %332, %v330
      %v334 = vpop.permute.xlu0 %333
      %335 = vset.pattern.permute.xlu0 0
      %336 = vperm.xlu0 %335, %v331
      %v337 = vpop.permute.xlu0 %336
      %vm338 = vcmp.eq.s32.totalorder %v324, %v334
      %vm339 = vcmp.eq.s32.totalorder %v325, %v334
      %vm340 = vcmp.eq.s32.totalorder %v324, %v337
      %vm341 = vcmp.eq.s32.totalorder %v325, %v337
      %v342 = vsel %vm338, %v319, %v245
      %v343 = vsel %vm339, %v320, %v246
      %v344 = vsel %vm340, %v321, %v247
      %v345 = vsel %vm341, %v322, %v248
      %v346 = vmul.f32 %v342, 32.0
      %v347 = vmul.f32 %v343, 32.0
      %v348 = vmul.f32 %v344, 32.0
      %v349 = vmul.f32 %v345, 32.0
      %350 = vst [vmem:[#allocation7] sm:$0xff] %v346
      %351 = vst [vmem:[#allocation7 + $0x8] sm:$0xff] %v347
      %352 = vst [vmem:[#allocation7 + $0x10] sm:$0xff] %v348
      %353 = vst [vmem:[#allocation7 + $0x18] sm:$0xff] %v349
    $region29: #{tpu_custom_call.1} parent=1 // pred_fallthru
      _
    %p354 = scmp.le.s32.totalorder %s250, 0
    // Predicated region
    $region30: #{tpu_custom_call.1} parent=1 // pred_check
      %p355 = pneg %p354
    $region31: #{tpu_custom_call.1} parent=1 // pred_check_branch
      %357 = sbr.rel (%p355) target = $region33
    $region32: #{tpu_custom_call.1} parent=1 // pred_region
      %v358 = vmul.f32 %v245, 32.0
      %v359 = vmul.f32 %v246, 32.0
      %v360 = vmul.f32 %v247, 32.0
      %v361 = vmul.f32 %v248, 32.0
      %362 = vst [vmem:[#allocation7] sm:$0xff] %v358
      %363 = vst [vmem:[#allocation7 + $0x8] sm:$0xff] %v359
      %364 = vst [vmem:[#allocation7 + $0x10] sm:$0xff] %v360
      %365 = vst [vmem:[#allocation7 + $0x18] sm:$0xff] %v361
    $region33: #{tpu_custom_call.1} parent=1 // pred_fallthru
      _
    // Predicated region
    $region34: #{tpu_custom_call.1} parent=1 // pred_check
      _
    $region35: #{tpu_custom_call.1} parent=1 // pred_check_branch
      %367 = sbr.rel (0) target = $region37
    $region36: #{tpu_custom_call.1} parent=1 // pred_region
      %s369 = ssub.s32 512, 512
      %370 = vsyncadd [#allocation6], %s369
      %s371 = sshll.u32 [#allocation7], 4
      %s372 = int_to_ptr.vmem [resolvable:$true] %s371
      %377 = dma.vmem_to_hbm [thread:$0]  %s372, 512, %s6, [#allocation6], 256, 256, 16
    $region37: #{tpu_custom_call.1} parent=1 // pred_fallthru
      _
    // Predicated region
    $region38: #{tpu_custom_call.1} parent=1 // pred_check
      _
    $region39: #{tpu_custom_call.1} parent=1 // pred_check_branch
      %379 = sbr.rel (0) target = $region41
    $region40: #{tpu_custom_call.1} parent=1 // pred_region
      %380 = dma.done [#allocation6], 512
    $region41: #{tpu_custom_call.1} parent=1 // pred_fallthru
      _
    %381 = vsyncpa [#allocation5], 1
    %382 = vsyncpa [#allocation6], 1

</llo_original>
